<compile_context>
chip_gen: v6e
topology: v6e:2x2x1
jax: 0.10.0
libtpu: 0.0.40
codegen_flags: <defaults>
</compile_context>

<pallas_src>
import functools

import numpy as np
import jax
import jax.numpy as jnp
from jax.experimental import pallas as pl
from jax.experimental.pallas import tpu as pltpu

IMAGENET_DEFAULT_MEAN = (0.485, 0.456, 0.406)
IMAGENET_DEFAULT_STD = (0.229, 0.224, 0.225)


# ----------------------------------------------------------------------------
# Host-side glue: build the (antialiased) PIL-bilinear resize matrices.
# Mirrors PIL's triangle-filter resampling (support scaled when downsampling).
# ----------------------------------------------------------------------------
def _pil_bilinear_matrix(in_size: int, out_size: int) -> np.ndarray:
    scale = in_size / out_size
    filterscale = max(scale, 1.0)
    support = 1.0 * filterscale  # bilinear filter support = 1.0
    mat = np.zeros((out_size, in_size), dtype=np.float64)
    for i in range(out_size):
        center = (i + 0.5) * scale
        xmin = max(int(center - support + 0.5), 0)
        xmax = min(int(center + support + 0.5), in_size)
        xs = np.arange(xmin, xmax, dtype=np.float64)
        w = 1.0 - np.abs((xs + 0.5 - center) / filterscale)
        w = np.clip(w, 0.0, None)
        s = w.sum()
        if s > 0.0:
            w = w / s
        mat[i, xmin:xmax] = w
    return mat


def _resize_crop_matrices(h_in: int, w_in: int, img_size: int):
    crop_ratio = 224.0 / 256.0
    resize_short = int(img_size / crop_ratio)
    # torchvision short-side resize rule
    if h_in <= w_in:
        new_h = resize_short
        new_w = int(resize_short * w_in / h_in)
    else:
        new_w = resize_short
        new_h = int(resize_short * h_in / w_in)
    mat_h = _pil_bilinear_matrix(h_in, new_h)   # (new_h, h_in)
    mat_w = _pil_bilinear_matrix(w_in, new_w)   # (new_w, w_in)
    # torchvision CenterCrop rounding
    # TODO(synk): pad case (crop larger than the resized image) is not handled.
    top = int(round((new_h - img_size) / 2.0))
    left = int(round((new_w - img_size) / 2.0))
    rh = mat_h[top:top + img_size].astype(np.float32)   # (S, h_in)
    rw = mat_w[left:left + img_size].astype(np.float32) # (S, w_in)
    return rh, rw


# ----------------------------------------------------------------------------
# Pallas kernel: single invocation, uint8 input, two MXU matmuls, scalar-add
# epilogue (all scales pre-folded into the resize matrices).
# ----------------------------------------------------------------------------
def _transform_kernel(bias_ref, x_ref, rwt_ref, rh_ref, o_ref, *,
                      num_channels: int, h_in: int):
    # bias_ref : SMEM (C,)              f32   -mean[c]/std[c]
    # x_ref    : VMEM (C*H_in, W_in)    uint8
    # rwt_ref  : VMEM (W_in, S_pad)     f32   Rw^T / 255  (zero-padded lanes)
    # rh_ref   : VMEM (C, S, H_in)      f32   Rh / std[c]
    # o_ref    : VMEM (C, S, S_pad)     f32
    x = x_ref[...].astype(jnp.float32)                              # (C*H_in, W_in)
    # W-contraction for all channels in one MXU call (lane-dense result).
    xw = jnp.dot(x, rwt_ref[...], preferred_element_type=jnp.float32)  # (C*H_in, S_pad)
    # Statically unrolled H-contraction per channel + scalar-bias epilogue.
    for c in range(num_channels):
        xw_c = xw[c * h_in:(c + 1) * h_in, :]                       # (H_in, S_pad)
        y = jnp.dot(rh_ref[c], xw_c, preferred_element_type=jnp.float32)  # (S, S_pad)
        o_ref[c] = y + bias_ref[c]


def downstream_classification_test_transform(sample_hwc_u8, img_size: int = 16):
    h_in, w_in, num_c = sample_hwc_u8.shape
    rh, rw = _resize_crop_matrices(h_in, w_in, img_size)   # np f32

    # Lane-dense output: pad the last dim up to a multiple of 128.
    s_pad = max(128, ((img_size + 127) // 128) * 128)

    mean = np.asarray(IMAGENET_DEFAULT_MEAN[:num_c], np.float32)
    invstd = (1.0 / np.asarray(IMAGENET_DEFAULT_STD[:num_c], np.float64)).astype(np.float32)

    # Fold ToTensor's 1/255 into Rw^T (zero-padded to lane-dense width).
    rwt_pad = np.zeros((w_in, s_pad), dtype=np.float32)
    rwt_pad[:, :img_size] = rw.T * (1.0 / 255.0)
    # Fold Normalize's 1/std into a per-channel Rh.
    rh_all = (rh[None, :, :] * invstd[:, None, None]).astype(np.float32)  # (C, S, h_in)
    # Remaining epilogue is a single scalar add per channel.
    bias = (-mean * invstd).astype(np.float32)                             # (C,)

    # ToTensor layout change (HWC -> CHW) done while still uint8; the float
    # cast happens inside the kernel (input DMA stays 1 byte/pixel).
    x_flat = jnp.transpose(sample_hwc_u8, (2, 0, 1)).reshape(num_c * h_in, w_in)

    kernel = functools.partial(_transform_kernel, num_channels=num_c, h_in=h_in)
    out_pad = pl.pallas_call(
        kernel,
        in_specs=[
            pl.BlockSpec(memory_space=pltpu.MemorySpace.SMEM),   # bias (C,)
            pl.BlockSpec(memory_space=pltpu.MemorySpace.VMEM),   # x uint8 (C*H_in, W_in)
            pl.BlockSpec(memory_space=pltpu.MemorySpace.VMEM),   # Rw^T/255 (W_in, S_pad)
            pl.BlockSpec(memory_space=pltpu.MemorySpace.VMEM),   # Rh/std   (C, S, H_in)
        ],
        out_specs=pl.BlockSpec(memory_space=pltpu.MemorySpace.VMEM),
        out_shape=jax.ShapeDtypeStruct((num_c, img_size, s_pad), jnp.float32),
    )(jnp.asarray(bias), x_flat, jnp.asarray(rwt_pad), jnp.asarray(rh_all))

    # Drop the lane padding -> (C, img_size, img_size), matching ToTensor/Normalize.
    return out_pad[:, :, :img_size]


# ----------------------------------------------------------------------------
# Pure-JAX reference (unfolded math) for correctness checking.
# ----------------------------------------------------------------------------
def _reference(sample_hwc_u8, img_size: int = 16):
    h_in, w_in, _ = sample_hwc_u8.shape
    rh, rw = _resize_crop_matrices(h_in, w_in, img_size)
    rh = jnp.asarray(rh, jnp.float32)
    rwt = jnp.asarray(np.ascontiguousarray(rw.T), jnp.float32)
    x = jnp.transpose(sample_hwc_u8.astype(jnp.float32), (2, 0, 1)) / 255.0
    y = jnp.einsum("oh,chw,wp->cop", rh, x, rwt)
    mean = jnp.asarray(IMAGENET_DEFAULT_MEAN, jnp.float32)[:, None, None]
    std = jnp.asarray(IMAGENET_DEFAULT_STD, jnp.float32)[:, None, None]
    return (y - mean) / std


if __name__ == "__main__":
    key = jax.random.PRNGKey(0)
    # Small "PIL-like" image: H=20, W=24, 3 channels, uint8.
    sample = jax.random.randint(key, (20, 24, 3), 0, 256, dtype=jnp.int32).astype(jnp.uint8)

    img_size = 16  # module default is 224; small shape consistent with the forward
    out = downstream_classification_test_transform(sample, img_size=img_size)
    out = jax.block_until_ready(out)

    ref = _reference(sample, img_size=img_size)
    assert out.shape == (3, img_size, img_size), out.shape
    np.testing.assert_allclose(np.asarray(out), np.asarray(ref), rtol=1e-3, atol=1e-3)

    print("KERNEL_OK")
</pallas_src>

<mosaic_0001>
module attributes {stable_mosaic.version = 11 : i64} {
  func.func @_transform_kernel(%arg0: memref<3xf32, #tpu.memory_space<smem>>, %arg1: memref<60x24xi8, #tpu.memory_space<vmem>>, %arg2: memref<24x128xf32, #tpu.memory_space<vmem>>, %arg3: memref<3x16x20xf32, #tpu.memory_space<vmem>>, %arg4: memref<3x16x128xf32, #tpu.memory_space<vmem>>) attributes {dimension_semantics = [], scalar_prefetch = 0 : i64, scratch_operands = 0 : i64, tpu.core_type = #tpu.core_type<tc>} {
    %c0 = arith.constant 0 : index
    %c0_0 = arith.constant 0 : index
    %0 = vector.load %arg1[%c0, %c0_0] : memref<60x24xi8, #tpu.memory_space<vmem>>, vector<60x24xi8>
    %1 = arith.uitofp %0 : vector<60x24xi8> to vector<60x24xf32>
    %c0_1 = arith.constant 0 : index
    %c0_2 = arith.constant 0 : index
    %2 = vector.load %arg2[%c0_1, %c0_2] : memref<24x128xf32, #tpu.memory_space<vmem>>, vector<24x128xf32>
    %cst = arith.constant dense<0.000000e+00> : vector<60x128xf32>
    %3 = tpu.matmul %1, %2, %cst {dimension_numbers = #tpu.dot_dimension_numbers<[1], [0], [0], [1], [0, 0, 1, 1], [], []>} : vector<60x24xf32>, vector<24x128xf32>, vector<60x128xf32> -> vector<60x128xf32>
    %4 = vector.extract_strided_slice %3 {offsets = [0, 0], sizes = [20, 128], strides = [1, 1]} : vector<60x128xf32> to vector<20x128xf32>
    %c0_3 = arith.constant 0 : index
    %c0_4 = arith.constant 0 : index
    %c0_5 = arith.constant 0 : index
    %5 = vector.load %arg3[%c0_3, %c0_4, %c0_5] : memref<3x16x20xf32, #tpu.memory_space<vmem>>, vector<1x16x20xf32>
    %6 = vector.shape_cast %5 : vector<1x16x20xf32> to vector<16x20xf32>
    %cst_6 = arith.constant dense<0.000000e+00> : vector<16x128xf32>
    %7 = tpu.matmul %6, %4, %cst_6 {dimension_numbers = #tpu.dot_dimension_numbers<[1], [0], [0], [1], [0, 0, 1, 1], [], []>} : vector<16x20xf32>, vector<20x128xf32>, vector<16x128xf32> -> vector<16x128xf32>
    %c0_7 = arith.constant 0 : index
    %8 = memref.load %arg0[%c0_7] : memref<3xf32, #tpu.memory_space<smem>>
    %9 = vector.broadcast %8 : f32 to vector<16x128xf32>
    %10 = arith.addf %7, %9 : vector<16x128xf32>
    %c0_8 = arith.constant 0 : index
    %c0_9 = arith.constant 0 : index
    %c0_10 = arith.constant 0 : index
    %11 = vector.load %arg4[%c0_8, %c0_9, %c0_10] : memref<3x16x128xf32, #tpu.memory_space<vmem>>, vector<1x16x128xf32>
    %12 = vector.shape_cast %11 : vector<1x16x128xf32> to vector<16x128xf32>
    %13 = vector.shape_cast %10 : vector<16x128xf32> to vector<1x16x128xf32>
    tpu.vector_store %arg4[%c0_8, %c0_9, %c0_10], %13 {strides = array<i32>} : memref<3x16x128xf32, #tpu.memory_space<vmem>>, vector<1x16x128xf32>,
    %14 = vector.extract_strided_slice %3 {offsets = [20, 0], sizes = [20, 128], strides = [1, 1]} : vector<60x128xf32> to vector<20x128xf32>
    %c1 = arith.constant 1 : index
    %c0_11 = arith.constant 0 : index
    %c0_12 = arith.constant 0 : index
    %15 = vector.load %arg3[%c1, %c0_11, %c0_12] : memref<3x16x20xf32, #tpu.memory_space<vmem>>, vector<1x16x20xf32>
    %16 = vector.shape_cast %15 : vector<1x16x20xf32> to vector<16x20xf32>
    %cst_13 = arith.constant dense<0.000000e+00> : vector<16x128xf32>
    %17 = tpu.matmul %16, %14, %cst_13 {dimension_numbers = #tpu.dot_dimension_numbers<[1], [0], [0], [1], [0, 0, 1, 1], [], []>} : vector<16x20xf32>, vector<20x128xf32>, vector<16x128xf32> -> vector<16x128xf32>
    %c1_14 = arith.constant 1 : index
    %18 = memref.load %arg0[%c1_14] : memref<3xf32, #tpu.memory_space<smem>>
    %19 = vector.broadcast %18 : f32 to vector<16x128xf32>
    %20 = arith.addf %17, %19 : vector<16x128xf32>
    %c1_15 = arith.constant 1 : index
    %c0_16 = arith.constant 0 : index
    %c0_17 = arith.constant 0 : index
    %21 = vector.load %arg4[%c1_15, %c0_16, %c0_17] : memref<3x16x128xf32, #tpu.memory_space<vmem>>, vector<1x16x128xf32>
    %22 = vector.shape_cast %21 : vector<1x16x128xf32> to vector<16x128xf32>
    %23 = vector.shape_cast %20 : vector<16x128xf32> to vector<1x16x128xf32>
    tpu.vector_store %arg4[%c1_15, %c0_16, %c0_17], %23 {strides = array<i32>} : memref<3x16x128xf32, #tpu.memory_space<vmem>>, vector<1x16x128xf32>,
    %24 = vector.extract_strided_slice %3 {offsets = [40, 0], sizes = [20, 128], strides = [1, 1]} : vector<60x128xf32> to vector<20x128xf32>
    %c2 = arith.constant 2 : index
    %c0_18 = arith.constant 0 : index
    %c0_19 = arith.constant 0 : index
    %25 = vector.load %arg3[%c2, %c0_18, %c0_19] : memref<3x16x20xf32, #tpu.memory_space<vmem>>, vector<1x16x20xf32>
    %26 = vector.shape_cast %25 : vector<1x16x20xf32> to vector<16x20xf32>
    %cst_20 = arith.constant dense<0.000000e+00> : vector<16x128xf32>
    %27 = tpu.matmul %26, %24, %cst_20 {dimension_numbers = #tpu.dot_dimension_numbers<[1], [0], [0], [1], [0, 0, 1, 1], [], []>} : vector<16x20xf32>, vector<20x128xf32>, vector<16x128xf32> -> vector<16x128xf32>
    %c2_21 = arith.constant 2 : index
    %28 = memref.load %arg0[%c2_21] : memref<3xf32, #tpu.memory_space<smem>>
    %29 = vector.broadcast %28 : f32 to vector<16x128xf32>
    %30 = arith.addf %27, %29 : vector<16x128xf32>
    %c2_22 = arith.constant 2 : index
    %c0_23 = arith.constant 0 : index
    %c0_24 = arith.constant 0 : index
    %31 = vector.load %arg4[%c2_22, %c0_23, %c0_24] : memref<3x16x128xf32, #tpu.memory_space<vmem>>, vector<1x16x128xf32>
    %32 = vector.shape_cast %31 : vector<1x16x128xf32> to vector<16x128xf32>
    %33 = vector.shape_cast %30 : vector<16x128xf32> to vector<1x16x128xf32>
    tpu.vector_store %arg4[%c2_22, %c0_23, %c0_24], %33 {strides = array<i32>} : memref<3x16x128xf32, #tpu.memory_space<vmem>>, vector<1x16x128xf32>,
    return
  }
}

</mosaic_0001>

<llo_original>
// kernel: tpu_custom_call.1
$region0: #{tpu_custom_call.1}
  #allocation0 [shape = 'u32[]', space=smem, size = 0x4, offset = 0x4, fixed_abs, tag = 'smem constant byte address 0x4 - core index']
  #allocation1 [shape = 'u32[144,128]{1,0:T(1,128)}', space=vmem, size = 0x12000, scoped, tag = 'internal scratch']
  %s0 = inlined_call_operand.vmem [shape: f32[3], index: 0, kind: input, shape index: {}]
  %s1 = inlined_call_operand.vmem [shape: u8[60,24], index: 1, kind: input, shape index: {}]
  %s2 = inlined_call_operand.vmem [shape: f32[24,128], index: 2, kind: input, shape index: {}]
  %s3 = inlined_call_operand.hbm [shape: f32[3,16,20], index: 3, kind: input, shape index: {}]
  %s4 = inlined_call_operand.hbm [shape: f32[3,16,128], index: 4, kind: output, shape index: {}]
  %s5 = sld [smem:[#allocation0]]
  $region34: #{tpu_custom_call.1} parent=0
    _
  %s7 = ssub.s32 1, %s5
  %s8 = scalar_select 0, %s7, %s5
  $region1: #{tpu_custom_call.1} parent=0
    #allocation2 [shape = 'u8[512]{0}', space=smem, size = 0x200, scoped, tag = 'input window, operand 0, single buffered']
    #allocation3 [shape = 's32[1]{0}', space=sflag, size = 0x4, scoped, tag = 'scoped memory for tpu_custom_call.1']
    #allocation4 [shape = 's32[1]{0}', space=sflag, size = 0x4, scoped, tag = 'scoped memory for tpu_custom_call.1']
    #allocation5 [shape = 's32[1]{0}', space=sflag, size = 0x4, scoped, tag = 'scoped memory for tpu_custom_call.1']
    #allocation6 [shape = 'u8[24576]{0}', space=vmem, size = 0x6000, scoped, tag = 'input window, operand 3, single buffered']
    #allocation7 [shape = 'u8[24576]{0}', space=vmem, size = 0x6000, scoped, tag = 'output window, operand 0, single buffered']
    %9 = vsyncpa [#allocation5], 0
    %10 = vsyncpa [#allocation3], 0
    %11 = vsyncpa [#allocation4], 0
    // Predicated region
    $region2: #{tpu_custom_call.1} parent=1 // pred_check
      _
    $region3: #{tpu_custom_call.1} parent=1 // pred_check_branch
      %13 = sbr.rel (0) target = $region5
    $region4: #{tpu_custom_call.1} parent=1 // pred_region
      %s15 = ssub.s32 16, 16
      %16 = vsyncadd [#allocation5], %s15
      %s18 = sshll.u32 %s0, 4
      %s19 = int_to_ptr.vmem [resolvable:$true] %s18
      %21 = dma.vmem_to_smem %s19, 16, [#allocation2], [#allocation5]
    $region5: #{tpu_custom_call.1} parent=1 // pred_fallthru
      _
    // Predicated region
    $region6: #{tpu_custom_call.1} parent=1 // pred_check
      _
    $region7: #{tpu_custom_call.1} parent=1 // pred_check_branch
      %23 = sbr.rel (0) target = $region9
    $region8: #{tpu_custom_call.1} parent=1 // pred_region
      _
    $region9: #{tpu_custom_call.1} parent=1 // pred_fallthru
      _
    // Predicated region
    $region10: #{tpu_custom_call.1} parent=1 // pred_check
      _
    $region11: #{tpu_custom_call.1} parent=1 // pred_check_branch
      %25 = sbr.rel (0) target = $region13
    $region12: #{tpu_custom_call.1} parent=1 // pred_region
      _
    $region13: #{tpu_custom_call.1} parent=1 // pred_fallthru
      _
    // Predicated region
    $region14: #{tpu_custom_call.1} parent=1 // pred_check
      _
    $region15: #{tpu_custom_call.1} parent=1 // pred_check_branch
      %27 = sbr.rel (0) target = $region17
    $region16: #{tpu_custom_call.1} parent=1 // pred_region
      %s29 = ssub.s32 768, 768
      %30 = vsyncadd [#allocation3], %s29
      %s31 = sshll.u32 [#allocation6], 4
      %s32 = int_to_ptr.vmem [resolvable:$true] %s31
      %37 = dma.hbm_to_vmem [thread:$0]  %s3, 768, %s32, [#allocation3], 128, 128, 8
    $region17: #{tpu_custom_call.1} parent=1 // pred_fallthru
      _
    // Predicated region
    $region18: #{tpu_custom_call.1} parent=1 // pred_check
      _
    $region19: #{tpu_custom_call.1} parent=1 // pred_check_branch
      %39 = sbr.rel (0) target = $region21
    $region20: #{tpu_custom_call.1} parent=1 // pred_region
      %40 = dma.done [#allocation5], 16
    $region21: #{tpu_custom_call.1} parent=1 // pred_fallthru
      _
    // Predicated region
    $region22: #{tpu_custom_call.1} parent=1 // pred_check
      _
    $region23: #{tpu_custom_call.1} parent=1 // pred_check_branch
      %42 = sbr.rel (0) target = $region25
    $region24: #{tpu_custom_call.1} parent=1 // pred_region
      %43 = dma.done [#allocation3], 768
    $region25: #{tpu_custom_call.1} parent=1 // pred_fallthru
      _
    %44 = sfence
    %v45 = vld [vmem:[%s1] sm:$0x3]
    %v46 = vld [vmem:[%s1 + $0x2] sm:$0x3]
    %v47 = vld [vmem:[%s1 + $0x4] sm:$0x3]
    %v48 = vld [vmem:[%s1 + $0x6] sm:$0x3]
    %v49 = vld [vmem:[%s1 + $0x8] sm:$0x3]
    %v50 = vld [vmem:[%s1 + $0xa] sm:$0x3]
    %v51 = vld [vmem:[%s1 + $0xc] sm:$0x3]
    %v52 = vld [vmem:[%s1 + $0xe] sm:$0x1]
    %v53 = vunpack.c.0.s8 %v45
    %v54 = vunpack.c.0.s8 %v46
    %v55 = vunpack.c.0.s8 %v47
    %v56 = vunpack.c.0.s8 %v48
    %v57 = vunpack.c.0.s8 %v49
    %v58 = vunpack.c.0.s8 %v50
    %v59 = vunpack.c.0.s8 %v51
    %v60 = vunpack.c.0.s8 %v52
    %v61 = vand.u32 %v53, 255
    %v62 = vand.u32 %v54, 255
    %v63 = vand.u32 %v55, 255
    %v64 = vand.u32 %v56, 255
    %v65 = vand.u32 %v57, 255
    %v66 = vand.u32 %v58, 255
    %v67 = vand.u32 %v59, 255
    %v68 = vand.u32 %v60, 255
    %v69 = vcvt.s32.f32 %v61
    %v70 = vcvt.s32.f32 %v62
    %v71 = vcvt.s32.f32 %v63
    %v72 = vcvt.s32.f32 %v64
    %v73 = vcvt.s32.f32 %v65
    %v74 = vcvt.s32.f32 %v66
    %v75 = vcvt.s32.f32 %v67
    %v76 = vcvt.s32.f32 %v68
    %v77 = vld [vmem:[%s2] sm:$0xff]
    %v78 = vld [vmem:[%s2 + $0x8] sm:$0xff]
    %v79 = vld [vmem:[%s2 + $0x10] sm:$0xff]
    %vm80 = vcmask 195584
    %v82 = vsel %vm80, %v69, 0
    %v85 = vsel %vm80, %v70, 0
    %v88 = vsel %vm80, %v71, 0
    %v91 = vsel %vm80, %v72, 0
    %v94 = vsel %vm80, %v73, 0
    %v97 = vsel %vm80, %v74, 0
    %v100 = vsel %vm80, %v75, 0
    %v103 = vsel %vm80, %v76, 0
    %105 = vmatprep.subr.mxu0 0.0
    %106 = vmatpush1.msra.mxu0 0.0
    %107 = vmatprep.subr.mxu0 0.0
    %108 = vmatpush1.msra.mxu0 0.0
    %109 = vmatprep.subr.mxu0 0.0
    %110 = vmatpush1.msra.mxu0 0.0
    %111 = vmatprep.subr.mxu0 0.0
    %112 = vmatpush1.msra.mxu0 0.0
    %113 = vmatprep.subr.mxu0 0.0
    %114 = vmatpush1.msra.mxu0 0.0
    %115 = vmatprep.subr.mxu0 0.0
    %116 = vmatpush1.msra.mxu0 0.0
    %117 = vmatprep.subr.mxu0 0.0
    %118 = vmatpush1.msra.mxu0 0.0
    %119 = vmatprep.subr.mxu0 0.0
    %120 = vmatpush1.msra.mxu0 0.0
    %121 = vmatprep.subr.mxu0 0.0
    %122 = vmatpush1.msra.mxu0 0.0
    %123 = vmatprep.subr.mxu0 0.0
    %124 = vmatpush1.msra.mxu0 0.0
    %125 = vmatprep.subr.mxu0 0.0
    %126 = vmatpush1.msra.mxu0 0.0
    %127 = vmatprep.subr.mxu0 0.0
    %128 = vmatpush1.msra.mxu0 0.0
    %129 = vmatprep.subr.mxu0 0.0
    %130 = vmatpush1.msra.mxu0 0.0
    %131 = vmatprep.subr.mxu0 0.0
    %132 = vmatpush1.msra.mxu0 %v79
    %133 = vmatprep.subr.mxu0 0.0
    %134 = vmatpush1.msra.mxu0 %v78
    %135 = vmatprep.subr.mxu0 0.0
    %136 = vmatpush1.msra.mxu0 %v77
    %137 = vmatprep.subr.mxu0 0.0
    %138 = vmatpush2.msra.mxu0 0.0
    %139 = vmatprep.subr.mxu0 0.0
    %140 = vmatpush2.msra.mxu0 0.0
    %141 = vmatprep.subr.mxu0 0.0
    %142 = vmatpush2.msra.mxu0 0.0
    %143 = vmatprep.subr.mxu0 0.0
    %144 = vmatpush2.msra.mxu0 0.0
    %145 = vmatprep.subr.mxu0 0.0
    %146 = vmatpush2.msra.mxu0 0.0
    %147 = vmatprep.subr.mxu0 0.0
    %148 = vmatpush2.msra.mxu0 0.0
    %149 = vmatprep.subr.mxu0 0.0
    %150 = vmatpush2.msra.mxu0 0.0
    %151 = vmatprep.subr.mxu0 0.0
    %152 = vmatpush2.msra.mxu0 0.0
    %153 = vmatprep.subr.mxu0 0.0
    %154 = vmatpush2.msra.mxu0 0.0
    %155 = vmatprep.subr.mxu0 0.0
    %156 = vmatpush2.msra.mxu0 0.0
    %157 = vmatprep.subr.mxu0 0.0
    %158 = vmatpush2.msra.mxu0 0.0
    %159 = vmatprep.subr.mxu0 0.0
    %160 = vmatpush2.msra.mxu0 0.0
    %161 = vmatprep.subr.mxu0 0.0
    %162 = vmatpush2.msra.mxu0 0.0
    %163 = vmatprep.subr.mxu0 0.0
    %164 = vmatpush2.msra.mxu0 0.0
    %165 = vmatprep.subr.mxu0 0.0
    %166 = vmatpush2.msra.mxu0 0.0
    %167 = vmatprep.subr.mxu0 0.0
    %168 = vmatpush2.msra.mxu0 0.0
    %169 = vmatprep.mubr.f32.mxu0 0.0
    %170 = vmatmul.mubr.f32.gmra.mxu0 %v82
    %v171 = vpop.f32.mrf.mxu0
    %v172 = vadd.f32 0.0, %v171
    %v173 = vpop.f32.mrf.mxu0
    %174 = vmatprep.mubr.f32.mxu0 0.0
    %175 = vmatmul.mubr.f32.gmra.mxu0 %v85
    %v176 = vpop.f32.mrf.mxu0
    %v177 = vadd.f32 0.0, %v176
    %v178 = vpop.f32.mrf.mxu0
    %179 = vmatprep.mubr.f32.mxu0 0.0
    %180 = vmatmul.mubr.f32.gmra.mxu0 %v88
    %v181 = vpop.f32.mrf.mxu0
    %v182 = vadd.f32 0.0, %v181
    %v183 = vpop.f32.mrf.mxu0
    %184 = vmatprep.mubr.f32.mxu0 0.0
    %185 = vmatmul.mubr.f32.gmra.mxu0 %v91
    %v186 = vpop.f32.mrf.mxu0
    %v187 = vadd.f32 0.0, %v186
    %v188 = vpop.f32.mrf.mxu0
    %189 = vmatprep.mubr.f32.mxu0 0.0
    %190 = vmatmul.mubr.f32.gmra.mxu0 %v94
    %v191 = vpop.f32.mrf.mxu0
    %v192 = vadd.f32 0.0, %v191
    %v193 = vpop.f32.mrf.mxu0
    %194 = vmatprep.mubr.f32.mxu0 0.0
    %195 = vmatmul.mubr.f32.gmra.mxu0 %v97
    %v196 = vpop.f32.mrf.mxu0
    %v197 = vadd.f32 0.0, %v196
    %v198 = vpop.f32.mrf.mxu0
    %199 = vmatprep.mubr.f32.mxu0 0.0
    %200 = vmatmul.mubr.f32.gmra.mxu0 %v100
    %v201 = vpop.f32.mrf.mxu0
    %v202 = vadd.f32 0.0, %v201
    %v203 = vpop.f32.mrf.mxu0
    %204 = vmatprep.mubr.f32.mxu0 0.0
    %205 = vmatmul.mubr.f32.gmra.mxu0 %v103
    %v206 = vpop.f32.mrf.mxu0
    %v207 = vadd.f32 0.0, %v206
    %v208 = vpop.f32.mrf.mxu0
    %209 = vdwg.mxu0
    %v210 = vld [vmem:[#allocation6] sm:$0xff]
    %v211 = vld [vmem:[#allocation6 + $0x8] sm:$0xff]
    %s212 = sld [smem:[#allocation2]]
    %v213 = vstv %s212
    %vm214 = vcmask 162816
    %v216 = vsel %vm214, %v210, 0
    %v219 = vsel %vm214, %v211, 0
    %vm221 = vcmask 1043456
    %v223 = vsel %vm221, %v182, 0
    %225 = vmatprep.subr.mxu0 0.0
    %226 = vmatpush1.msra.mxu0 0.0
    %227 = vmatprep.subr.mxu0 0.0
    %228 = vmatpush1.msra.mxu0 0.0
    %229 = vmatprep.subr.mxu0 0.0
    %230 = vmatpush1.msra.mxu0 0.0
    %231 = vmatprep.subr.mxu0 0.0
    %232 = vmatpush1.msra.mxu0 0.0
    %233 = vmatprep.subr.mxu0 0.0
    %234 = vmatpush1.msra.mxu0 0.0
    %235 = vmatprep.subr.mxu0 0.0
    %236 = vmatpush1.msra.mxu0 0.0
    %237 = vmatprep.subr.mxu0 0.0
    %238 = vmatpush1.msra.mxu0 0.0
    %239 = vmatprep.subr.mxu0 0.0
    %240 = vmatpush1.msra.mxu0 0.0
    %241 = vmatprep.subr.mxu0 0.0
    %242 = vmatpush1.msra.mxu0 0.0
    %243 = vmatprep.subr.mxu0 0.0
    %244 = vmatpush1.msra.mxu0 0.0
    %245 = vmatprep.subr.mxu0 0.0
    %246 = vmatpush1.msra.mxu0 0.0
    %247 = vmatprep.subr.mxu0 0.0
    %248 = vmatpush1.msra.mxu0 0.0
    %249 = vmatprep.subr.mxu0 0.0
    %250 = vmatpush1.msra.mxu0 0.0
    %251 = vmatprep.subr.mxu0 0.0
    %252 = vmatpush1.msra.mxu0 %v223
    %253 = vmatprep.subr.mxu0 0.0
    %254 = vmatpush1.msra.mxu0 %v177
    %255 = vmatprep.subr.mxu0 0.0
    %256 = vmatpush1.msra.mxu0 %v172
    %257 = vmatprep.subr.mxu0 0.0
    %258 = vmatpush2.msra.mxu0 0.0
    %259 = vmatprep.subr.mxu0 0.0
    %260 = vmatpush2.msra.mxu0 0.0
    %261 = vmatprep.subr.mxu0 0.0
    %262 = vmatpush2.msra.mxu0 0.0
    %263 = vmatprep.subr.mxu0 0.0
    %264 = vmatpush2.msra.mxu0 0.0
    %265 = vmatprep.subr.mxu0 0.0
    %266 = vmatpush2.msra.mxu0 0.0
    %267 = vmatprep.subr.mxu0 0.0
    %268 = vmatpush2.msra.mxu0 0.0
    %269 = vmatprep.subr.mxu0 0.0
    %270 = vmatpush2.msra.mxu0 0.0
    %271 = vmatprep.subr.mxu0 0.0
    %272 = vmatpush2.msra.mxu0 0.0
    %273 = vmatprep.subr.mxu0 0.0
    %274 = vmatpush2.msra.mxu0 0.0
    %275 = vmatprep.subr.mxu0 0.0
    %276 = vmatpush2.msra.mxu0 0.0
    %277 = vmatprep.subr.mxu0 0.0
    %278 = vmatpush2.msra.mxu0 0.0
    %279 = vmatprep.subr.mxu0 0.0
    %280 = vmatpush2.msra.mxu0 0.0
    %281 = vmatprep.subr.mxu0 0.0
    %282 = vmatpush2.msra.mxu0 0.0
    %283 = vmatprep.subr.mxu0 0.0
    %284 = vmatpush2.msra.mxu0 0.0
    %285 = vmatprep.subr.mxu0 0.0
    %286 = vmatpush2.msra.mxu0 0.0
    %287 = vmatprep.subr.mxu0 0.0
    %288 = vmatpush2.msra.mxu0 0.0
    %289 = vmatprep.mubr.f32.mxu0 0.0
    %290 = vmatmul.mubr.f32.gmra.mxu0 %v216
    %v291 = vpop.f32.mrf.mxu0
    %v292 = vadd.f32 %v213, %v291
    %v293 = vpop.f32.mrf.mxu0
    %294 = vmatprep.mubr.f32.mxu0 0.0
    %295 = vmatmul.mubr.f32.gmra.mxu0 %v219
    %v296 = vpop.f32.mrf.mxu0
    %v297 = vadd.f32 %v213, %v296
    %v298 = vpop.f32.mrf.mxu0
    %299 = vdwg.mxu0
    %300 = vst [vmem:[#allocation7] sm:$0xff] %v292
    %301 = vst [vmem:[#allocation7 + $0x8] sm:$0xff] %v297
    %s302 = scalar_lea.vmem [#allocation6], 16
    %v303 = vld [vmem:[%s302] sm:$0xff]
    %v304 = vld [vmem:[%s302 + $0x8] sm:$0xff]
    %s305 = sld [smem:[#allocation2 + $0x1]]
    %v306 = vstv %s305
    %v309 = vrot.slane %v182, 4
    %v310 = vrot.slane %v187, 4
    %v311 = vsel %vm221, %v309, %v310
    %v312 = vrot.slane %v192, 4
    %v313 = vsel %vm221, %v310, %v312
    %v317 = vsel %vm214, %v303, 0
    %v320 = vsel %vm214, %v304, 0
    %v322 = vsel %vm221, %v312, 0
    %324 = vmatprep.subr.mxu0 0.0
    %325 = vmatpush1.msra.mxu0 0.0
    %326 = vmatprep.subr.mxu0 0.0
    %327 = vmatpush1.msra.mxu0 0.0
    %328 = vmatprep.subr.mxu0 0.0
    %329 = vmatpush1.msra.mxu0 0.0
    %330 = vmatprep.subr.mxu0 0.0
    %331 = vmatpush1.msra.mxu0 0.0
    %332 = vmatprep.subr.mxu0 0.0
    %333 = vmatpush1.msra.mxu0 0.0
    %334 = vmatprep.subr.mxu0 0.0
    %335 = vmatpush1.msra.mxu0 0.0
    %336 = vmatprep.subr.mxu0 0.0
    %337 = vmatpush1.msra.mxu0 0.0
    %338 = vmatprep.subr.mxu0 0.0
    %339 = vmatpush1.msra.mxu0 0.0
    %340 = vmatprep.subr.mxu0 0.0
    %341 = vmatpush1.msra.mxu0 0.0
    %342 = vmatprep.subr.mxu0 0.0
    %343 = vmatpush1.msra.mxu0 0.0
    %344 = vmatprep.subr.mxu0 0.0
    %345 = vmatpush1.msra.mxu0 0.0
    %346 = vmatprep.subr.mxu0 0.0
    %347 = vmatpush1.msra.mxu0 0.0
    %348 = vmatprep.subr.mxu0 0.0
    %349 = vmatpush1.msra.mxu0 0.0
    %350 = vmatprep.subr.mxu0 0.0
    %351 = vmatpush1.msra.mxu0 %v322
    %352 = vmatprep.subr.mxu0 0.0
    %353 = vmatpush1.msra.mxu0 %v313
    %354 = vmatprep.subr.mxu0 0.0
    %355 = vmatpush1.msra.mxu0 %v311
    %356 = vmatprep.subr.mxu0 0.0
    %357 = vmatpush2.msra.mxu0 0.0
    %358 = vmatprep.subr.mxu0 0.0
    %359 = vmatpush2.msra.mxu0 0.0
    %360 = vmatprep.subr.mxu0 0.0
    %361 = vmatpush2.msra.mxu0 0.0
    %362 = vmatprep.subr.mxu0 0.0
    %363 = vmatpush2.msra.mxu0 0.0
    %364 = vmatprep.subr.mxu0 0.0
    %365 = vmatpush2.msra.mxu0 0.0
    %366 = vmatprep.subr.mxu0 0.0
    %367 = vmatpush2.msra.mxu0 0.0
    %368 = vmatprep.subr.mxu0 0.0
    %369 = vmatpush2.msra.mxu0 0.0
    %370 = vmatprep.subr.mxu0 0.0
    %371 = vmatpush2.msra.mxu0 0.0
    %372 = vmatprep.subr.mxu0 0.0
    %373 = vmatpush2.msra.mxu0 0.0
    %374 = vmatprep.subr.mxu0 0.0
    %375 = vmatpush2.msra.mxu0 0.0
    %376 = vmatprep.subr.mxu0 0.0
    %377 = vmatpush2.msra.mxu0 0.0
    %378 = vmatprep.subr.mxu0 0.0
    %379 = vmatpush2.msra.mxu0 0.0
    %380 = vmatprep.subr.mxu0 0.0
    %381 = vmatpush2.msra.mxu0 0.0
    %382 = vmatprep.subr.mxu0 0.0
    %383 = vmatpush2.msra.mxu0 0.0
    %384 = vmatprep.subr.mxu0 0.0
    %385 = vmatpush2.msra.mxu0 0.0
    %386 = vmatprep.subr.mxu0 0.0
    %387 = vmatpush2.msra.mxu0 0.0
    %388 = vmatprep.mubr.f32.mxu0 0.0
    %389 = vmatmul.mubr.f32.gmra.mxu0 %v317
    %v390 = vpop.f32.mrf.mxu0
    %v391 = vadd.f32 %v306, %v390
    %v392 = vpop.f32.mrf.mxu0
    %393 = vmatprep.mubr.f32.mxu0 0.0
    %394 = vmatmul.mubr.f32.gmra.mxu0 %v320
    %v395 = vpop.f32.mrf.mxu0
    %v396 = vadd.f32 %v306, %v395
    %v397 = vpop.f32.mrf.mxu0
    %398 = vdwg.mxu0
    %s399 = scalar_lea.vmem [#allocation7], 16
    %400 = vst [vmem:[%s399] sm:$0xff] %v391
    %401 = vst [vmem:[%s399 + $0x8] sm:$0xff] %v396
    %s402 = scalar_lea.vmem [#allocation6], 32
    %v403 = vld [vmem:[%s402] sm:$0xff]
    %v404 = vld [vmem:[%s402 + $0x8] sm:$0xff]
    %s405 = sld [smem:[#allocation2 + $0x2]]
    %v406 = vstv %s405
    %v408 = vsel %vm214, %v403, 0
    %v411 = vsel %vm214, %v404, 0
    %v414 = vsel %vm221, %v207, 0
    %416 = vmatprep.subr.mxu0 0.0
    %417 = vmatpush1.msra.mxu0 0.0
    %418 = vmatprep.subr.mxu0 0.0
    %419 = vmatpush1.msra.mxu0 0.0
    %420 = vmatprep.subr.mxu0 0.0
    %421 = vmatpush1.msra.mxu0 0.0
    %422 = vmatprep.subr.mxu0 0.0
    %423 = vmatpush1.msra.mxu0 0.0
    %424 = vmatprep.subr.mxu0 0.0
    %425 = vmatpush1.msra.mxu0 0.0
    %426 = vmatprep.subr.mxu0 0.0
    %427 = vmatpush1.msra.mxu0 0.0
    %428 = vmatprep.subr.mxu0 0.0
    %429 = vmatpush1.msra.mxu0 0.0
    %430 = vmatprep.subr.mxu0 0.0
    %431 = vmatpush1.msra.mxu0 0.0
    %432 = vmatprep.subr.mxu0 0.0
    %433 = vmatpush1.msra.mxu0 0.0
    %434 = vmatprep.subr.mxu0 0.0
    %435 = vmatpush1.msra.mxu0 0.0
    %436 = vmatprep.subr.mxu0 0.0
    %437 = vmatpush1.msra.mxu0 0.0
    %438 = vmatprep.subr.mxu0 0.0
    %439 = vmatpush1.msra.mxu0 0.0
    %440 = vmatprep.subr.mxu0 0.0
    %441 = vmatpush1.msra.mxu0 0.0
    %442 = vmatprep.subr.mxu0 0.0
    %443 = vmatpush1.msra.mxu0 %v414
    %444 = vmatprep.subr.mxu0 0.0
    %445 = vmatpush1.msra.mxu0 %v202
    %446 = vmatprep.subr.mxu0 0.0
    %447 = vmatpush1.msra.mxu0 %v197
    %448 = vmatprep.subr.mxu0 0.0
    %449 = vmatpush2.msra.mxu0 0.0
    %450 = vmatprep.subr.mxu0 0.0
    %451 = vmatpush2.msra.mxu0 0.0
    %452 = vmatprep.subr.mxu0 0.0
    %453 = vmatpush2.msra.mxu0 0.0
    %454 = vmatprep.subr.mxu0 0.0
    %455 = vmatpush2.msra.mxu0 0.0
    %456 = vmatprep.subr.mxu0 0.0
    %457 = vmatpush2.msra.mxu0 0.0
    %458 = vmatprep.subr.mxu0 0.0
    %459 = vmatpush2.msra.mxu0 0.0
    %460 = vmatprep.subr.mxu0 0.0
    %461 = vmatpush2.msra.mxu0 0.0
    %462 = vmatprep.subr.mxu0 0.0
    %463 = vmatpush2.msra.mxu0 0.0
    %464 = vmatprep.subr.mxu0 0.0
    %465 = vmatpush2.msra.mxu0 0.0
    %466 = vmatprep.subr.mxu0 0.0
    %467 = vmatpush2.msra.mxu0 0.0
    %468 = vmatprep.subr.mxu0 0.0
    %469 = vmatpush2.msra.mxu0 0.0
    %470 = vmatprep.subr.mxu0 0.0
    %471 = vmatpush2.msra.mxu0 0.0
    %472 = vmatprep.subr.mxu0 0.0
    %473 = vmatpush2.msra.mxu0 0.0
    %474 = vmatprep.subr.mxu0 0.0
    %475 = vmatpush2.msra.mxu0 0.0
    %476 = vmatprep.subr.mxu0 0.0
    %477 = vmatpush2.msra.mxu0 0.0
    %478 = vmatprep.subr.mxu0 0.0
    %479 = vmatpush2.msra.mxu0 0.0
    %480 = vmatprep.mubr.f32.mxu0 0.0
    %481 = vmatmul.mubr.f32.gmra.mxu0 %v408
    %v482 = vpop.f32.mrf.mxu0
    %v483 = vadd.f32 %v406, %v482
    %v484 = vpop.f32.mrf.mxu0
    %485 = vmatprep.mubr.f32.mxu0 0.0
    %486 = vmatmul.mubr.f32.gmra.mxu0 %v411
    %v487 = vpop.f32.mrf.mxu0
    %v488 = vadd.f32 %v406, %v487
    %v489 = vpop.f32.mrf.mxu0
    %490 = vdwg.mxu0
    %s491 = scalar_lea.vmem [#allocation7], 32
    %492 = vst [vmem:[%s491] sm:$0xff] %v483
    %493 = vst [vmem:[%s491 + $0x8] sm:$0xff] %v488
    // Predicated region
    $region26: #{tpu_custom_call.1} parent=1 // pred_check
      _
    $region27: #{tpu_custom_call.1} parent=1 // pred_check_branch
      %495 = sbr.rel (0) target = $region29
    $region28: #{tpu_custom_call.1} parent=1 // pred_region
      %s497 = ssub.s32 768, 768
      %498 = vsyncadd [#allocation4], %s497
      %s499 = sshll.u32 [#allocation7], 4
      %s500 = int_to_ptr.vmem [resolvable:$true] %s499
      %505 = dma.vmem_to_hbm [thread:$0]  %s500, 768, %s4, [#allocation4], 128, 128, 8
    $region29: #{tpu_custom_call.1} parent=1 // pred_fallthru
      _
    // Predicated region
    $region30: #{tpu_custom_call.1} parent=1 // pred_check
      _
    $region31: #{tpu_custom_call.1} parent=1 // pred_check_branch
      %507 = sbr.rel (0) target = $region33
    $region32: #{tpu_custom_call.1} parent=1 // pred_region
      %508 = dma.done [#allocation4], 768
    $region33: #{tpu_custom_call.1} parent=1 // pred_fallthru
      _
    %509 = vsyncpa [#allocation3], 1
    %510 = vsyncpa [#allocation4], 1
    %511 = vsyncpa [#allocation5], 1

</llo_original>
